<compile_context>
chip_gen: v6e
topology: v6e:2x2x1
jax: 0.10.0
libtpu: 0.0.40
codegen_flags: <defaults>
</compile_context>

<pallas_src>
import jax
import jax.numpy as jnp
from jax import lax
from jax.experimental import pallas as pl
from jax.experimental.pallas import tpu as pltpu

_LANE = 128
_EXTRA = 8  # ones-columns appended to wv^T so one matmul also yields the S-sum


def _pick_block_b(b, c, n_pad):
    """Batch elements per grid step: amortize per-step overhead (~0.35 us) while
    keeping >=2 grid steps (both v7x TensorCores busy) and modest block VMEM."""
    per_batch = c * n_pad * 4           # one f32 (C, N) block
    budget = 8 << 20                    # x + out blocks, each double-buffered
    bb = 1
    for cand in range(1, b + 1):
        if b % cand:
            continue
        if b >= 2 and (b // cand) < 2:
            continue
        if 4 * cand * per_batch > budget:
            continue
        bb = cand
    return bb


def external_attention(x_nchw, wk, wv):
    """x_nchw: (B, C, H, W) f32; wk: (S, C); wv: (C, S) — torch Linear weights."""
    b, c, h, w = x_nchw.shape
    n = h * w
    s = wk.shape[0]
    n_pad = ((n + _LANE - 1) // _LANE) * _LANE

    # Free contiguous reshape; pad tokens to a lane multiple so writebacks stay
    # unmasked vst (padded tokens are masked out of the softmax and cropped).
    x_bcn = x_nchw.reshape(b, c, n)
    if n_pad != n:
        x_bcn = jnp.pad(x_bcn, ((0, 0), (0, 0), (0, n_pad - n)))

    # bf16 weights cast once in the wrapper: halves weight DMA/VMEM and removes
    # the per-grid-step VPU cast.  wv is passed transposed (S, C) and augmented
    # with ones-columns: after the in-kernel per-s scale by the softmax
    # reciprocal, a single lhs-contracted MXU matmul produces both the mv
    # output (rows :C) and the per-token S-sum for the renorm (rows C:).
    wk_bf = wk.astype(jnp.bfloat16)
    wv_aug = jnp.concatenate(
        [wv.T, jnp.ones((s, _EXTRA), wv.dtype)], axis=1).astype(jnp.bfloat16)

    bb = _pick_block_b(b, c, n_pad)
    grid = (b // bb,)

    def kernel(x_ref, wk_ref, wva_ref, o_ref):
        wk_t = wk_ref[...]          # (S, C)      bf16, grid-invariant
        wva = wva_ref[...]          # (S, C+8)    bf16, grid-invariant
        if n_pad != n:
            lane = lax.broadcasted_iota(jnp.int32, (s, n_pad), 1)
            valid = lane < n
        for ib in range(bb):        # static unroll over the batch sub-block
            # logits[s, t] == (q @ Wk^T)[t, s]; bf16 MXU matmul, f32 accumulate.
            logits = jnp.dot(wk_t, x_ref[ib].astype(jnp.bfloat16),
                             preferred_element_type=jnp.float32)       # (S, N)
            # Softmax over tokens (torch Softmax(dim=1)) -> lane axis here.
            m = jnp.max(logits, axis=1, keepdims=True)                  # (S, 1)
            e = jnp.exp(logits - m)
            if n_pad != n:
                e = jnp.where(valid, e, 0.0)
            # Exact reciprocal here (only the renorm below uses approx EUP).
            col_inv = 1.0 / jnp.sum(e, axis=1, keepdims=True)           # (S, 1)
            # Fold the per-s softmax scale into the tiny weight columns instead
            # of an O(S*N) VPU multiply over the attention tile.
            wva_s = (wva * col_inv).astype(jnp.bfloat16)                # (S, C+8)
            # Single MXU matmul, lhs contracted on S (same dim-numbers pattern
            # as the shipped flash-attention dkv kernel).
            res = lax.dot_general(wva_s, e.astype(jnp.bfloat16),
                                  (((0,), (0,)), ((), ())),
                                  preferred_element_type=jnp.float32)   # (C+8, N)
            out = res[:c]                                               # (C, N)
            row_inv = pl.reciprocal(1e-9 + res[c:c + 1], approx=True)   # (1, N)
            # Residual + ReLU; re-read x_ref here so the f32 block is not kept
            # live across the matmuls (lower vreg/spill pressure as C*N grows).
            o_ref[ib] = jnp.maximum(x_ref[ib] + out * row_inv,
                                    0.0).astype(o_ref.dtype)

    # Rough resident-VMEM estimate -> explicit scoped-VMEM limit (v5e default is
    # only 16 MiB).  NOTE(v7x): for production C*N re-derive against the 64 MiB
    # budget and tile N (two-pass / online softmax over tokens) if needed; also
    # if B == 1, split a parallel C- or N-tile axis so both TCs get work.
    est = (4 * bb * c * n_pad * 4                        # 2x-buffered x + out
           + 2 * (s * c + s * (c + _EXTRA)) * 2          # 2x-buffered bf16 weights
           + (3 * s * n_pad + 2 * (c + _EXTRA) * n_pad) * 4)  # live intermediates
    vmem_limit = int(min(48 << 20, max(32 << 20, 2 * est)))

    out_bcn = pl.pallas_call(
        kernel,
        out_shape=jax.ShapeDtypeStruct((b, c, n_pad), x_nchw.dtype),
        grid_spec=pltpu.PrefetchScalarGridSpec(
            num_scalar_prefetch=0,
            grid=grid,
            in_specs=[
                pl.BlockSpec((bb, c, n_pad), lambda i: (i, 0, 0)),
                pl.BlockSpec((s, c), lambda i: (0, 0)),
                pl.BlockSpec((s, c + _EXTRA), lambda i: (0, 0)),
            ],
            out_specs=pl.BlockSpec((bb, c, n_pad), lambda i: (i, 0, 0)),
        ),
        compiler_params=pltpu.CompilerParams(
            dimension_semantics=("parallel",),
            vmem_limit_bytes=vmem_limit),
    )(x_bcn, wk_bf, wv_aug)

    if n_pad != n:
        out_bcn = out_bcn[:, :, :n]
    return out_bcn.reshape(b, c, h, w)


def external_attention_ref(x_nchw, wk, wv):
    """Pure-JAX f32 reference mirroring the torch forward exactly."""
    b, c, h, w = x_nchw.shape
    n = h * w
    q = jnp.transpose(x_nchw.reshape(b, c, n), (0, 2, 1))        # (B, N, C)
    attn = jnp.einsum("bnc,sc->bns", q, wk)                      # mk
    attn = jax.nn.softmax(attn, axis=1)                          # Softmax(dim=1)
    attn = attn / (1e-9 + jnp.sum(attn, axis=2, keepdims=True))
    attn = jnp.einsum("bns,cs->bnc", attn, wv)                   # mv
    x_attn = jnp.transpose(attn, (0, 2, 1)).reshape(b, c, h, w)
    return jax.nn.relu(x_nchw + x_attn)


if __name__ == "__main__":
    # module defaults: d_model (=C) = 64, S = 64; spatial 16x16 -> N = 256
    B, C, H, W = 2, 64, 16, 16
    S = 64

    key = jax.random.PRNGKey(0)
    kx, kk, kv = jax.random.split(key, 3)

    x = jax.random.normal(kx, (B, C, H, W), dtype=jnp.float32)
    # deterministic synthetic Linear weights (scaled uniform)
    wk = (jax.random.uniform(kk, (S, C), dtype=jnp.float32) - 0.5) * (2.0 / jnp.sqrt(C))
    wv = (jax.random.uniform(kv, (C, S), dtype=jnp.float32) - 0.5) * (2.0 / jnp.sqrt(S))

    out = external_attention(x, wk, wv)
    out = jax.block_until_ready(out)

    ref = external_attention_ref(x, wk, wv)
    assert out.shape == (B, C, H, W)
    # bf16 MXU operands (f32 accumulation); exact softmax reciprocal lets us
    # tighten the tolerance vs. the previous 2e-2.
    assert jnp.allclose(out, ref, atol=1e-2, rtol=1e-2), "mismatch vs pure-JAX reference"

    print("KERNEL_OK")
</pallas_src>

<mosaic_0001>
module attributes {stable_mosaic.version = 11 : i64} {
  func.func @kernel(%arg0: i32, %arg1: memref<1x64x256xf32, #tpu.memory_space<vmem>>, %arg2: memref<64x64xbf16, #tpu.memory_space<vmem>>, %arg3: memref<64x72xbf16, #tpu.memory_space<vmem>>, %arg4: memref<1x64x256xf32, #tpu.memory_space<vmem>>) attributes {dimension_semantics = [#tpu.dimension_semantics<parallel>], iteration_bounds = array<i64: 2>, scalar_prefetch = 0 : i64, scratch_operands = 0 : i64, tpu.core_type = #tpu.core_type<tc>, window_params = [{transform_indices = @transform_0, window_bounds = array<i64: 1, 64, 256>}, {pipeline_mode = #tpu.pipeline_mode<synchronous>, transform_indices = @transform_1, window_bounds = array<i64: 64, 64>}, {pipeline_mode = #tpu.pipeline_mode<synchronous>, transform_indices = @transform_2, window_bounds = array<i64: 64, 72>}, {transform_indices = @transform_3, window_bounds = array<i64: 1, 64, 256>}]} {
    %c0 = arith.constant 0 : index
    %c0_0 = arith.constant 0 : index
    %0 = vector.load %arg2[%c0, %c0_0] : memref<64x64xbf16, #tpu.memory_space<vmem>>, vector<64x64xbf16>
    %c0_1 = arith.constant 0 : index
    %c0_2 = arith.constant 0 : index
    %1 = vector.load %arg3[%c0_1, %c0_2] : memref<64x72xbf16, #tpu.memory_space<vmem>>, vector<64x72xbf16>
    %c0_3 = arith.constant 0 : index
    %c0_4 = arith.constant 0 : index
    %c0_5 = arith.constant 0 : index
    %2 = vector.load %arg1[%c0_3, %c0_4, %c0_5] : memref<1x64x256xf32, #tpu.memory_space<vmem>>, vector<1x64x256xf32>
    %3 = vector.shape_cast %2 : vector<1x64x256xf32> to vector<64x256xf32>
    %4 = arith.truncf %3 : vector<64x256xf32> to vector<64x256xbf16>
    %cst = arith.constant dense<0.000000e+00> : vector<64x256xf32>
    %5 = tpu.matmul %0, %4, %cst {dimension_numbers = #tpu.dot_dimension_numbers<[1], [0], [0], [1], [0, 0, 1, 1], [], []>} : vector<64x64xbf16>, vector<64x256xbf16>, vector<64x256xf32> -> vector<64x256xf32>
    %cst_6 = arith.constant dense<0xFF800000> : vector<64xf32>
    %6 = vector.multi_reduction <maximumf>, %5, %cst_6 [1] : vector<64x256xf32> to vector<64xf32>
    %7 = vector.shape_cast %6 : vector<64xf32> to vector<64x1xf32>
    %8 = vector.broadcast %7 : vector<64x1xf32> to vector<64x256xf32>
    %9 = arith.subf %5, %8 : vector<64x256xf32>
    %10 = math.exp %9 : vector<64x256xf32>
    %cst_7 = arith.constant dense<0.000000e+00> : vector<64xf32>
    %11 = vector.multi_reduction <add>, %10, %cst_7 [1] : vector<64x256xf32> to vector<64xf32>
    %12 = vector.shape_cast %11 : vector<64xf32> to vector<64x1xf32>
    %cst_8 = arith.constant 1.000000e+00 : f32
    %13 = vector.broadcast %cst_8 : f32 to vector<64x1xf32>
    %14 = arith.divf %13, %12 : vector<64x1xf32>
    %15 = arith.extf %1 : vector<64x72xbf16> to vector<64x72xf32>
    %16 = vector.broadcast %14 : vector<64x1xf32> to vector<64x72xf32>
    %17 = arith.mulf %15, %16 : vector<64x72xf32>
    %18 = arith.truncf %17 : vector<64x72xf32> to vector<64x72xbf16>
    %19 = arith.truncf %10 : vector<64x256xf32> to vector<64x256xbf16>
    %cst_9 = arith.constant dense<0.000000e+00> : vector<72x256xf32>
    %20 = tpu.matmul %18, %19, %cst_9 {dimension_numbers = #tpu.dot_dimension_numbers<[0], [0], [1], [1], [0, 1, 1, 1], [], []>} : vector<64x72xbf16>, vector<64x256xbf16>, vector<72x256xf32> -> vector<72x256xf32>
    %21 = vector.extract_strided_slice %20 {offsets = [0, 0], sizes = [64, 256], strides = [1, 1]} : vector<72x256xf32> to vector<64x256xf32>
    %22 = vector.extract_strided_slice %20 {offsets = [64, 0], sizes = [1, 256], strides = [1, 1]} : vector<72x256xf32> to vector<1x256xf32>
    %cst_10 = arith.constant 9.99999971E-10 : f32
    %23 = vector.broadcast %cst_10 : f32 to vector<1x256xf32>
    %24 = arith.addf %23, %22 : vector<1x256xf32>
    %25 = tpu.reciprocal %24 {approx = true} : vector<1x256xf32> -> vector<1x256xf32>
    %c0_11 = arith.constant 0 : index
    %c0_12 = arith.constant 0 : index
    %c0_13 = arith.constant 0 : index
    %26 = vector.load %arg1[%c0_11, %c0_12, %c0_13] : memref<1x64x256xf32, #tpu.memory_space<vmem>>, vector<1x64x256xf32>
    %27 = vector.shape_cast %26 : vector<1x64x256xf32> to vector<64x256xf32>
    %28 = vector.broadcast %25 : vector<1x256xf32> to vector<64x256xf32>
    %29 = arith.mulf %21, %28 : vector<64x256xf32>
    %30 = arith.addf %27, %29 : vector<64x256xf32>
    %cst_14 = arith.constant 0.000000e+00 : f32
    %31 = vector.broadcast %cst_14 : f32 to vector<64x256xf32>
    %32 = arith.maximumf %30, %31 : vector<64x256xf32>
    %c0_15 = arith.constant 0 : index
    %c0_16 = arith.constant 0 : index
    %c0_17 = arith.constant 0 : index
    %33 = vector.load %arg4[%c0_15, %c0_16, %c0_17] : memref<1x64x256xf32, #tpu.memory_space<vmem>>, vector<1x64x256xf32>
    %34 = vector.shape_cast %33 : vector<1x64x256xf32> to vector<64x256xf32>
    %35 = vector.shape_cast %32 : vector<64x256xf32> to vector<1x64x256xf32>
    tpu.vector_store %arg4[%c0_15, %c0_16, %c0_17], %35 {strides = array<i32>} : memref<1x64x256xf32, #tpu.memory_space<vmem>>, vector<1x64x256xf32>,
    return
  }
  func.func @transform_0(%arg0: i32) -> (i32, i32, i32) {
    %c0_i32 = arith.constant 0 : i32
    %c0_i32_0 = arith.constant 0 : i32
    %c0_i32_1 = arith.constant 0 : i32
    return %arg0, %c0_i32, %c0_i32_0 : i32, i32, i32
  }
  func.func @transform_1(%arg0: i32) -> (i32, i32) {
    %c0_i32 = arith.constant 0 : i32
    %c0_i32_0 = arith.constant 0 : i32
    %c0_i32_1 = arith.constant 0 : i32
    return %c0_i32, %c0_i32_0 : i32, i32
  }
  func.func @transform_2(%arg0: i32) -> (i32, i32) {
    %c0_i32 = arith.constant 0 : i32
    %c0_i32_0 = arith.constant 0 : i32
    %c0_i32_1 = arith.constant 0 : i32
    return %c0_i32, %c0_i32_0 : i32, i32
  }
  func.func @transform_3(%arg0: i32) -> (i32, i32, i32) {
    %c0_i32 = arith.constant 0 : i32
    %c0_i32_0 = arith.constant 0 : i32
    %c0_i32_1 = arith.constant 0 : i32
    return %arg0, %c0_i32, %c0_i32_0 : i32, i32, i32
  }
}

</mosaic_0001>

<llo_original>
// kernel: tpu_custom_call.1
$region0: #{tpu_custom_call.1}
  #allocation0 [shape = 'u32[]', space=smem, size = 0x4, offset = 0x4, fixed_abs, tag = 'smem constant byte address 0x4 - core index']
  #allocation1 [shape = 'u32[144,128]{1,0:T(1,128)}', space=vmem, size = 0x12000, scoped, tag = 'internal scratch']
  %s0 = inlined_call_operand.hbm [shape: f32[2,64,256], index: 0, kind: input, shape index: {}]
  %s1 = inlined_call_operand.hbm [shape: bf16[64,64], index: 1, kind: input, shape index: {}]
  %s2 = inlined_call_operand.hbm [shape: bf16[64,72], index: 2, kind: input, shape index: {}]
  %s3 = inlined_call_operand.hbm [shape: f32[2,64,256], index: 3, kind: output, shape index: {}]
  %s4 = sld [smem:[#allocation0]]
  $region57: #{tpu_custom_call.1} parent=0
    _
  %s6 = ssub.s32 1, %s4
  %s7 = scalar_select 0, %s6, %s4
  $region1: #{tpu_custom_call.1} parent=0
    #allocation2 [shape = 'u8[131072]{0}', space=vmem, size = 0x20000, scoped, tag = 'input window, operand 0']
    #allocation3 [shape = 's32[2]{0}', space=sflag, size = 0x8, scoped, tag = 'scoped memory for tpu_custom_call.1']
    #allocation4 [shape = 's32[2]{0}', space=sflag, size = 0x8, scoped, tag = 'scoped memory for tpu_custom_call.1']
    #allocation5 [shape = 'u8[16384]{0}', space=vmem, size = 0x4000, scoped, tag = 'input window, operand 1, single buffered']
    #allocation6 [shape = 's32[1]{0}', space=sflag, size = 0x4, scoped, tag = 'scoped memory for tpu_custom_call.1']
    #allocation7 [shape = 'u8[16384]{0}', space=vmem, size = 0x4000, scoped, tag = 'input window, operand 2, single buffered']
    #allocation8 [shape = 'u8[131072]{0}', space=vmem, size = 0x20000, scoped, tag = 'output window, operand 0']
    %8 = vsyncpa [#allocation3], 0
    %s9 = scalar_lea.sflag [#allocation3], 1
    %10 = vsyncpa %s9, 0
    %11 = vsyncpa [#allocation6], 0
    %12 = vsyncpa [#allocation4], 0
    %s13 = scalar_lea.sflag [#allocation4], 1
    %14 = vsyncpa %s13, 0
    loop: start=0, step=1, limit=4
    $region2: #{tpu_custom_call.1} parent=1 // loop_pre_header
      _
    $region3: #{tpu_custom_call.1} parent=1 // loop_header
      %s16 = sphi 0, %s20
      %p17 = scmp.ge.s32.totalorder %s16, 4
      %s26 = sphi 0, %s28
      %s29 = sphi 0, %s26
      %s30 = sphi 0, %s29
      %s46 = sphi 0, %s30
      %s50 = sphi 0, %s50
      %s52 = sphi 0, %s50
      %s53 = sphi 0, %s52
      %s67 = sphi 0, %s53
      %s71 = sphi 0, %s71
      %s73 = sphi 0, %s71
      %s74 = sphi 0, %s73
      %s88 = sphi 0, %s74
      %s94 = sphi 0, %s96
      %s97 = sphi 0, %s94
      %s98 = sphi 0, %s97
      %s114 = sphi 0, %s98
    $region4: #{tpu_custom_call.1} parent=1 // loop_header_branch
      %19 = sbr.rel (%p17) target = $region8
    $region5: #{tpu_custom_call.1} parent=1 // loop_body
      %s21 = ssub.s32 %s16, 1
      %s22 = ssub.s32 %s16, 2
      %s23 = sadd.s32 %s16, 1
      %s24 = ssub.s32 %s16, %s23
      %p25 = scmp.eq.s32.totalorder %s24, 0
      %s27 = sadd.s32 %s26, 1
      %s28 = scalar_select %p25, %s26, %s27
      %p31 = pneg %p25
      %p32 = scmp.eq.s32.totalorder %s16, 1
      %p33 = por %p31, %p32
      %p34 = scmp.ne.s32.totalorder %s26, %s29
      %p35 = scmp.eq.s32.totalorder %s16, 0
      %p36 = por %p34, %p35
      %p37 = scmp.ne.s32.totalorder %s26, %s29
      %p38 = scmp.eq.s32.totalorder %s21, 1
      %p39 = por %p37, %p38
      %p40 = scmp.ne.s32.totalorder %s29, %s30
      %p41 = scmp.eq.s32.totalorder %s21, 0
      %p42 = por %p40, %p41
      %p43 = scmp.ne.s32.totalorder %s29, %s30
      %p44 = scmp.eq.s32.totalorder %s22, 1
      %p45 = por %p43, %p44
      %p47 = scmp.ne.s32.totalorder %s30, %s46
      %p48 = scmp.eq.s32.totalorder %s22, 0
      %p49 = por %p47, %p48
      %s51 = sadd.s32 %s50, 1
      %p54 = scmp.eq.s32.totalorder %s16, 1
      %p55 = scmp.ne.s32.totalorder %s50, %s52
      %p56 = scmp.eq.s32.totalorder %s16, 0
      %p57 = por %p55, %p56
      %p58 = scmp.ne.s32.totalorder %s50, %s52
      %p59 = scmp.eq.s32.totalorder %s21, 1
      %p60 = por %p58, %p59
      %p61 = scmp.ne.s32.totalorder %s52, %s53
      %p62 = scmp.eq.s32.totalorder %s21, 0
      %p63 = por %p61, %p62
      %p64 = scmp.ne.s32.totalorder %s52, %s53
      %p65 = scmp.eq.s32.totalorder %s22, 1
      %p66 = por %p64, %p65
      %p68 = scmp.ne.s32.totalorder %s53, %s67
      %p69 = scmp.eq.s32.totalorder %s22, 0
      %p70 = por %p68, %p69
      %s72 = sadd.s32 %s71, 1
      %p75 = scmp.eq.s32.totalorder %s16, 1
      %p76 = scmp.ne.s32.totalorder %s71, %s73
      %p77 = scmp.eq.s32.totalorder %s16, 0
      %p78 = por %p76, %p77
      %p79 = scmp.ne.s32.totalorder %s71, %s73
      %p80 = scmp.eq.s32.totalorder %s21, 1
      %p81 = por %p79, %p80
      %p82 = scmp.ne.s32.totalorder %s73, %s74
      %p83 = scmp.eq.s32.totalorder %s21, 0
      %p84 = por %p82, %p83
      %p85 = scmp.ne.s32.totalorder %s73, %s74
      %p86 = scmp.eq.s32.totalorder %s22, 1
      %p87 = por %p85, %p86
      %p89 = scmp.ne.s32.totalorder %s74, %s88
      %p90 = scmp.eq.s32.totalorder %s22, 0
      %p91 = por %p89, %p90
      %s92 = ssub.s32 %s16, %s23
      %p93 = scmp.eq.s32.totalorder %s92, 0
      %s95 = sadd.s32 %s94, 1
      %s96 = scalar_select %p93, %s94, %s95
      %p99 = pneg %p93
      %p100 = scmp.eq.s32.totalorder %s16, 1
      %p101 = por %p99, %p100
      %p102 = scmp.ne.s32.totalorder %s94, %s97
      %p103 = scmp.eq.s32.totalorder %s16, 0
      %p104 = por %p102, %p103
      %p105 = scmp.ne.s32.totalorder %s94, %s97
      %p106 = scmp.eq.s32.totalorder %s21, 1
      %p107 = por %p105, %p106
      %p108 = scmp.ne.s32.totalorder %s97, %s98
      %p109 = scmp.eq.s32.totalorder %s21, 0
      %p110 = por %p108, %p109
      %p111 = scmp.ne.s32.totalorder %s97, %s98
      %p112 = scmp.eq.s32.totalorder %s22, 1
      %p113 = por %p111, %p112
      %p115 = scmp.ne.s32.totalorder %s98, %s114
      %p116 = scmp.eq.s32.totalorder %s22, 0
      %p117 = por %p115, %p116
      %p118 = scmp.le.s32.totalorder 1, %s16
      %p119 = scmp.lt.s32.totalorder %s16, 3
      %p120 = pnand %p118, %p119
      %p121 = pneg %p120
      // Predicated region
      $region9: #{tpu_custom_call.1} parent=5 // pred_check
        _
      $region10: #{tpu_custom_call.1} parent=5 // pred_check_branch
        %123 = sbr.rel (%p120) target = $region12
      $region11: #{tpu_custom_call.1} parent=5 // pred_region
        %s124 = ssub.s32 %s16, 1
        // Predicated region
        $region13: #{tpu_custom_call.1} parent=11 // pred_check
          %p125 = pneg %p63
        $region14: #{tpu_custom_call.1} parent=11 // pred_check_branch
          %127 = sbr.rel (%p125) target = $region16
        $region15: #{tpu_custom_call.1} parent=11 // pred_region
          %s129 = ssub.s32 512, 512
          %130 = vsyncadd [#allocation6], %s129
          %s131 = sshll.u32 [#allocation5], 4
          %s132 = int_to_ptr.vmem [resolvable:$true] %s131
          %137 = dma.hbm_to_vmem [thread:$0]  %s1, 512, %s132, [#allocation6], 64, 64, 4
        $region16: #{tpu_custom_call.1} parent=11 // pred_fallthru
          _
        // Predicated region
        $region17: #{tpu_custom_call.1} parent=11 // pred_check
          %p138 = pneg %p84
        $region18: #{tpu_custom_call.1} parent=11 // pred_check_branch
          %140 = sbr.rel (%p138) target = $region20
        $region19: #{tpu_custom_call.1} parent=11 // pred_region
          %s142 = ssub.s32 512, 512
          %143 = vsyncadd [#allocation6], %s142
          %s144 = sshll.u32 [#allocation7], 4
          %s145 = int_to_ptr.vmem [resolvable:$true] %s144
          %150 = dma.hbm_to_vmem [thread:$0]  %s2, 512, %s145, [#allocation6], 64, 64, 4
        $region20: #{tpu_custom_call.1} parent=11 // pred_fallthru
          _
      $region12: #{tpu_custom_call.1} parent=5 // pred_fallthru
        _
      %p151 = scmp.lt.s32.totalorder %s16, 2
      // Predicated region
      $region21: #{tpu_custom_call.1} parent=5 // pred_check
        %p152 = pneg %p151
      $region22: #{tpu_custom_call.1} parent=5 // pred_check_branch
        %154 = sbr.rel (%p152) target = $region24
      $region23: #{tpu_custom_call.1} parent=5 // pred_region
        // Predicated region
        $region25: #{tpu_custom_call.1} parent=23 // pred_check
          %p155 = pneg %p36
        $region26: #{tpu_custom_call.1} parent=23 // pred_check_branch
          %157 = sbr.rel (%p155) target = $region28
        $region27: #{tpu_custom_call.1} parent=23 // pred_region
          %s158 = sand.u32 %s26, 1
          %s159 = scalar_lea.sflag [#allocation3], %s158
          %s160 = sand.u32 %s26, 1
          %s161 = smul.addr %s160, 128
          %s162 = scalar_lea.vmem [#allocation2], %s161
          %s164 = ssub.s32 2048, 2048
          %165 = vsyncadd %s159, %s164
          %s166 = smul.addr %s16, 16
          %s167 = smul.addr %s166, 128
          %s168 = scalar_lea.hbm %s0, %s167
          %s169 = sshll.u32 %s162, 4
          %s170 = int_to_ptr.vmem [resolvable:$true] %s169
          %175 = dma.hbm_to_vmem [thread:$0]  %s168, 2048, %s170, %s159, 256, 256, 16
        $region28: #{tpu_custom_call.1} parent=23 // pred_fallthru
          _
      $region24: #{tpu_custom_call.1} parent=5 // pred_fallthru
        _
      %p176 = scmp.le.s32.totalorder 1, %s16
      %p177 = scmp.lt.s32.totalorder %s16, 3
      %p178 = pnand %p176, %p177
      %p179 = pneg %p178
      // Predicated region
      $region29: #{tpu_custom_call.1} parent=5 // pred_check
        _
      $region30: #{tpu_custom_call.1} parent=5 // pred_check_branch
        %181 = sbr.rel (%p178) target = $region32
      $region31: #{tpu_custom_call.1} parent=5 // pred_region
        %s182 = ssub.s32 %s16, 1
        %s183 = sand.u32 %s29, 1
        %s184 = scalar_lea.sflag [#allocation3], %s183
        %s185 = sand.u32 %s29, 1
        %s186 = smul.addr %s185, 128
        %s187 = scalar_lea.vmem [#allocation2], %s186
        // Predicated region
        $region33: #{tpu_custom_call.1} parent=31 // pred_check
          %p188 = pneg %p42
        $region34: #{tpu_custom_call.1} parent=31 // pred_check_branch
          %190 = sbr.rel (%p188) target = $region36
        $region35: #{tpu_custom_call.1} parent=31 // pred_region
          %191 = dma.done %s184, 2048
        $region36: #{tpu_custom_call.1} parent=31 // pred_fallthru
          _
        // Predicated region
        $region37: #{tpu_custom_call.1} parent=31 // pred_check
          %p192 = pneg %p63
        $region38: #{tpu_custom_call.1} parent=31 // pred_check_branch
          %194 = sbr.rel (%p192) target = $region40
        $region39: #{tpu_custom_call.1} parent=31 // pred_region
          %195 = dma.done [#allocation6], 512
        $region40: #{tpu_custom_call.1} parent=31 // pred_fallthru
          _
        // Predicated region
        $region41: #{tpu_custom_call.1} parent=31 // pred_check
          %p196 = pneg %p84
        $region42: #{tpu_custom_call.1} parent=31 // pred_check_branch
          %198 = sbr.rel (%p196) target = $region44
        $region43: #{tpu_custom_call.1} parent=31 // pred_region
          %199 = dma.done [#allocation6], 512
        $region44: #{tpu_custom_call.1} parent=31 // pred_fallthru
          _
        %s200 = sand.u32 %s29, 1
        %s201 = scalar_lea.sflag [#allocation3], %s200
        %s202 = sand.u32 %s29, 1
        %s203 = smul.addr %s202, 128
        %s204 = scalar_lea.vmem [#allocation2], %s203
        %p205 = pneg %p42
        %p206 = pneg %p39
        %p207 = pneg %p63
        %p208 = pneg %p60
        %p209 = pneg %p84
        %p210 = pneg %p81
        %p211 = pneg %p110
        %p212 = pneg %p107
        %s213 = sand.u32 %s97, 1
        %s214 = scalar_lea.sflag [#allocation4], %s213
        %s215 = sand.u32 %s97, 1
        %s216 = smul.addr %s215, 128
        %s217 = scalar_lea.vmem [#allocation8], %s216
        %v219 = vld [vmem:[#allocation5] sm:$0xf]
        %v220 = vld [vmem:[#allocation5 + $0x4] sm:$0xf]
        %v221 = vld [vmem:[#allocation5 + $0x8] sm:$0xf]
        %v222 = vld [vmem:[#allocation5 + $0xc] sm:$0xf]
        %v223 = vld [vmem:[#allocation5 + $0x10] sm:$0xf]
        %v224 = vld [vmem:[#allocation5 + $0x14] sm:$0xf]
        %v225 = vld [vmem:[#allocation5 + $0x18] sm:$0xf]
        %v226 = vld [vmem:[#allocation5 + $0x1c] sm:$0xf]
        %v227 = vld [vmem:[#allocation7] sm:$0xf]
        %v228 = vld [vmem:[#allocation7 + $0x4] sm:$0xf]
        %v229 = vld [vmem:[#allocation7 + $0x8] sm:$0xf]
        %v230 = vld [vmem:[#allocation7 + $0xc] sm:$0xf]
        %v231 = vld [vmem:[#allocation7 + $0x10] sm:$0xf]
        %v232 = vld [vmem:[#allocation7 + $0x14] sm:$0xf]
        %v233 = vld [vmem:[#allocation7 + $0x18] sm:$0xf]
        %v234 = vld [vmem:[#allocation7 + $0x1c] sm:$0xf]
        %v235 = vld [vmem:[%s187] sm:$0xff]
        %v236 = vld [vmem:[%s187 + $0x8] sm:$0xff]
        %v237 = vld [vmem:[%s187 + $0x10] sm:$0xff]
        %v238 = vld [vmem:[%s187 + $0x18] sm:$0xff]
        %v239 = vld [vmem:[%s187 + $0x20] sm:$0xff]
        %v240 = vld [vmem:[%s187 + $0x28] sm:$0xff]
        %v241 = vld [vmem:[%s187 + $0x30] sm:$0xff]
        %v242 = vld [vmem:[%s187 + $0x38] sm:$0xff]
        %v243 = vld [vmem:[%s187 + $0x40] sm:$0xff]
        %v244 = vld [vmem:[%s187 + $0x48] sm:$0xff]
        %v245 = vld [vmem:[%s187 + $0x50] sm:$0xff]
        %v246 = vld [vmem:[%s187 + $0x58] sm:$0xff]
        %v247 = vld [vmem:[%s187 + $0x60] sm:$0xff]
        %v248 = vld [vmem:[%s187 + $0x68] sm:$0xff]
        %v249 = vld [vmem:[%s187 + $0x70] sm:$0xff]
        %v250 = vld [vmem:[%s187 + $0x78] sm:$0xff]
        %v251 = vpack.c.bf16 %v237, %v235
        %v252 = vpack.c.bf16 %v238, %v236
        %v253 = vpack.c.bf16 %v241, %v239
        %v254 = vpack.c.bf16 %v242, %v240
        %v255 = vpack.c.bf16 %v245, %v243
        %v256 = vpack.c.bf16 %v246, %v244
        %v257 = vpack.c.bf16 %v249, %v247
        %v258 = vpack.c.bf16 %v250, %v248
        %v267 = vunpack.c.l.b16 %v219
        %v268 = vunpack.c.l.b16 %v220
        %v269 = vunpack.c.l.b16 %v221
        %v270 = vunpack.c.l.b16 %v222
        %v271 = vunpack.c.l.b16 %v223
        %v272 = vunpack.c.l.b16 %v224
        %v273 = vunpack.c.l.b16 %v225
        %v274 = vunpack.c.l.b16 %v226
        %v275 = vpack.c.b16 %v268, %v267
        %v276 = vpack.c.b16 %v270, %v269
        %v277 = vpack.c.b16 %v272, %v271
        %v278 = vpack.c.b16 %v274, %v273
        %vm279 = vcmask 523264
        %v281 = vsel %vm279, %v275, 0
        %v284 = vsel %vm279, %v276, 0
        %v287 = vsel %vm279, %v277, 0
        %v290 = vsel %vm279, %v278, 0
        %292 = vmatprep.subr.bf16.mxu0 0
        %293 = vmatpush1.bf16.msra.mxu0 0
        %294 = vmatprep.subr.bf16.mxu0 0
        %295 = vmatpush1.bf16.msra.mxu0 0
        %296 = vmatprep.subr.bf16.mxu0 0
        %297 = vmatpush1.bf16.msra.mxu0 0
        %298 = vmatprep.subr.bf16.mxu0 0
        %299 = vmatpush1.bf16.msra.mxu0 0
        %300 = vmatprep.subr.bf16.mxu0 %v258
        %301 = vmatpush1.bf16.msra.mxu0 %v257
        %302 = vmatprep.subr.bf16.mxu0 %v256
        %303 = vmatpush1.bf16.msra.mxu0 %v255
        %304 = vmatprep.subr.bf16.mxu0 %v254
        %305 = vmatpush1.bf16.msra.mxu0 %v253
        %306 = vmatprep.subr.bf16.mxu0 %v252
        %307 = vmatpush1.bf16.msra.mxu0 %v251
        %308 = vmatprep.subr.bf16.mxu0 0
        %309 = vmatpush2.bf16.msra.mxu0 0
        %310 = vmatprep.subr.bf16.mxu0 0
        %311 = vmatpush2.bf16.msra.mxu0 0
        %312 = vmatprep.subr.bf16.mxu0 0
        %313 = vmatpush2.bf16.msra.mxu0 0
        %314 = vmatprep.subr.bf16.mxu0 0
        %315 = vmatpush2.bf16.msra.mxu0 0
        %316 = vmatprep.subr.bf16.mxu0 0
        %317 = vmatpush2.bf16.msra.mxu0 0
        %318 = vmatprep.subr.bf16.mxu0 0
        %319 = vmatpush2.bf16.msra.mxu0 0
        %320 = vmatprep.subr.bf16.mxu0 0
        %321 = vmatpush2.bf16.msra.mxu0 0
        %322 = vmatprep.subr.bf16.mxu0 0
        %323 = vmatpush2.bf16.msra.mxu0 0
        %324 = vmatprep.mubr.bf16.mxu0 0
        %325 = vmatmul.mubr.bf16.gmra.mxu0 %v281
        %v326 = vpop.f32.mrf.mxu0
        %v327 = vadd.f32 0.0, %v326
        %v328 = vpop.f32.mrf.mxu0
        %v329 = vadd.f32 0.0, %v328
        %v330 = vpop.f32.mrf.mxu0
        %v331 = vadd.f32 0.0, %v330
        %v332 = vpop.f32.mrf.mxu0
        %v333 = vadd.f32 0.0, %v332
        %334 = vmatprep.mubr.bf16.mxu0 0
        %335 = vmatmul.mubr.bf16.gmra.mxu0 %v284
        %v336 = vpop.f32.mrf.mxu0
        %v337 = vadd.f32 0.0, %v336
        %v338 = vpop.f32.mrf.mxu0
        %v339 = vadd.f32 0.0, %v338
        %v340 = vpop.f32.mrf.mxu0
        %v341 = vadd.f32 0.0, %v340
        %v342 = vpop.f32.mrf.mxu0
        %v343 = vadd.f32 0.0, %v342
        %344 = vmatprep.mubr.bf16.mxu0 0
        %345 = vmatmul.mubr.bf16.gmra.mxu0 %v287
        %v346 = vpop.f32.mrf.mxu0
        %v347 = vadd.f32 0.0, %v346
        %v348 = vpop.f32.mrf.mxu0
        %v349 = vadd.f32 0.0, %v348
        %v350 = vpop.f32.mrf.mxu0
        %v351 = vadd.f32 0.0, %v350
        %v352 = vpop.f32.mrf.mxu0
        %v353 = vadd.f32 0.0, %v352
        %354 = vmatprep.mubr.bf16.mxu0 0
        %355 = vmatmul.mubr.bf16.gmra.mxu0 %v290
        %v356 = vpop.f32.mrf.mxu0
        %v357 = vadd.f32 0.0, %v356
        %v358 = vpop.f32.mrf.mxu0
        %v359 = vadd.f32 0.0, %v358
        %v360 = vpop.f32.mrf.mxu0
        %v361 = vadd.f32 0.0, %v360
        %v362 = vpop.f32.mrf.mxu0
        %v363 = vadd.f32 0.0, %v362
        %364 = vdwg.mxu0
        %v365 = vmax.f32 %v327, %v329
        %366 = vmax.xlane.f32.xlu0 %v365
        %v367 = vpop.xlane.xlu0 %366
        %v368 = vmax.f32 %v331, %v333
        %369 = vmax.xlane.f32.xlu0 %v368
        %v370 = vpop.xlane.xlu0 %369
        %v371 = vmax.f32 %v337, %v339
        %372 = vmax.xlane.f32.xlu0 %v371
        %v373 = vpop.xlane.xlu0 %372
        %v374 = vmax.f32 %v341, %v343
        %375 = vmax.xlane.f32.xlu0 %v374
        %v376 = vpop.xlane.xlu0 %375
        %v377 = vmax.f32 %v347, %v349
        %378 = vmax.xlane.f32.xlu0 %v377
        %v379 = vpop.xlane.xlu0 %378
        %v380 = vmax.f32 %v351, %v353
        %381 = vmax.xlane.f32.xlu0 %v380
        %v382 = vpop.xlane.xlu0 %381
        %v383 = vmax.f32 %v357, %v359
        %384 = vmax.xlane.f32.xlu0 %v383
        %v385 = vpop.xlane.xlu0 %384
        %v386 = vmax.f32 %v361, %v363
        %387 = vmax.xlane.f32.xlu0 %v386
        %v388 = vpop.xlane.xlu0 %387
        %v389 = vsub.f32 %v327, %v367
        %v390 = vsub.f32 %v329, %v367
        %v391 = vsub.f32 %v331, %v370
        %v392 = vsub.f32 %v333, %v370
        %v393 = vsub.f32 %v337, %v373
        %v394 = vsub.f32 %v339, %v373
        %v395 = vsub.f32 %v341, %v376
        %v396 = vsub.f32 %v343, %v376
        %v397 = vsub.f32 %v347, %v379
        %v398 = vsub.f32 %v349, %v379
        %v399 = vsub.f32 %v351, %v382
        %v400 = vsub.f32 %v353, %v382
        %v401 = vsub.f32 %v357, %v385
        %v402 = vsub.f32 %v359, %v385
        %v403 = vsub.f32 %v361, %v388
        %v404 = vsub.f32 %v363, %v388
        %v405 = vmul.f32 %v389, 1.442695
        %v406 = vpow.pop %v405
        %v407 = vmul.f32 %v390, 1.442695
        %v408 = vpow.pop %v407
        %v409 = vmul.f32 %v391, 1.442695
        %v410 = vpow.pop %v409
        %v411 = vmul.f32 %v392, 1.442695
        %v412 = vpow.pop %v411
        %v413 = vmul.f32 %v393, 1.442695
        %v414 = vpow.pop %v413
        %v415 = vmul.f32 %v394, 1.442695
        %v416 = vpow.pop %v415
        %v417 = vmul.f32 %v395, 1.442695
        %v418 = vpow.pop %v417
        %v419 = vmul.f32 %v396, 1.442695
        %v420 = vpow.pop %v419
        %v421 = vmul.f32 %v397, 1.442695
        %v422 = vpow.pop %v421
        %v423 = vmul.f32 %v398, 1.442695
        %v424 = vpow.pop %v423
        %v425 = vmul.f32 %v399, 1.442695
        %v426 = vpow.pop %v425
        %v427 = vmul.f32 %v400, 1.442695
        %v428 = vpow.pop %v427
        %v429 = vmul.f32 %v401, 1.442695
        %v430 = vpow.pop %v429
        %v431 = vmul.f32 %v402, 1.442695
        %v432 = vpow.pop %v431
        %v433 = vmul.f32 %v403, 1.442695
        %v434 = vpow.pop %v433
        %v435 = vmul.f32 %v404, 1.442695
        %v436 = vpow.pop %v435
        %v437 = vadd.f32 %v406, %v408
        %438 = vadd.xlane.f32.xlu0 %v437
        %v439 = vpop.xlane.xlu0 %438
        %v440 = vadd.f32 %v410, %v412
        %441 = vadd.xlane.f32.xlu0 %v440
        %v442 = vpop.xlane.xlu0 %441
        %v443 = vadd.f32 %v414, %v416
        %444 = vadd.xlane.f32.xlu0 %v443
        %v445 = vpop.xlane.xlu0 %444
        %v446 = vadd.f32 %v418, %v420
        %447 = vadd.xlane.f32.xlu0 %v446
        %v448 = vpop.xlane.xlu0 %447
        %v449 = vadd.f32 %v422, %v424
        %450 = vadd.xlane.f32.xlu0 %v449
        %v451 = vpop.xlane.xlu0 %450
        %v452 = vadd.f32 %v426, %v428
        %453 = vadd.xlane.f32.xlu0 %v452
        %v454 = vpop.xlane.xlu0 %453
        %v455 = vadd.f32 %v430, %v432
        %456 = vadd.xlane.f32.xlu0 %v455
        %v457 = vpop.xlane.xlu0 %456
        %v458 = vadd.f32 %v434, %v436
        %459 = vadd.xlane.f32.xlu0 %v458
        %v460 = vpop.xlane.xlu0 %459
        %v461 = vrcp.pop %v439
        %v462 = vmul.f32 1.0, %v461
        %v463 = vrcp.pop %v442
        %v464 = vmul.f32 1.0, %v463
        %v465 = vrcp.pop %v445
        %v466 = vmul.f32 1.0, %v465
        %v467 = vrcp.pop %v448
        %v468 = vmul.f32 1.0, %v467
        %v469 = vrcp.pop %v451
        %v470 = vmul.f32 1.0, %v469
        %v471 = vrcp.pop %v454
        %v472 = vmul.f32 1.0, %v471
        %v473 = vrcp.pop %v457
        %v474 = vmul.f32 1.0, %v473
        %v475 = vrcp.pop %v460
        %v476 = vmul.f32 1.0, %v475
        %v477 = vunpack.c.l.bf16 %v227
        %v478 = vunpack.c.l.bf16 %v228
        %v479 = vunpack.c.l.bf16 %v229
        %v480 = vunpack.c.l.bf16 %v230
        %v481 = vunpack.c.l.bf16 %v231
        %v482 = vunpack.c.l.bf16 %v232
        %v483 = vunpack.c.l.bf16 %v233
        %v484 = vunpack.c.l.bf16 %v234
        %v485 = vmul.f32 %v477, %v462
        %v486 = vmul.f32 %v478, %v464
        %v487 = vmul.f32 %v479, %v466
        %v488 = vmul.f32 %v480, %v468
        %v489 = vmul.f32 %v481, %v470
        %v490 = vmul.f32 %v482, %v472
        %v491 = vmul.f32 %v483, %v474
        %v492 = vmul.f32 %v484, %v476
        %v493 = vpack.c.bf16 %v486, %v485
        %v494 = vpack.c.bf16 %v488, %v487
        %v495 = vpack.c.bf16 %v490, %v489
        %v496 = vpack.c.bf16 %v492, %v491
        %v497 = vpack.c.bf16 %v410, %v406
        %v498 = vpack.c.bf16 %v412, %v408
        %v499 = vpack.c.bf16 %v418, %v414
        %v500 = vpack.c.bf16 %v420, %v416
        %v501 = vpack.c.bf16 %v426, %v422
        %v502 = vpack.c.bf16 %v428, %v424
        %v503 = vpack.c.bf16 %v434, %v430
        %v504 = vpack.c.bf16 %v436, %v432
        %505 = vxpose.xlu0.c.b16.start [1/8] %v493, 128
        %506 = vxpose.xlu0.c.b16.cont [2/8] %v494, 128
        %507 = vxpose.xlu0.c.b16.cont [3/8] %v495, 128
        %508 = vxpose.xlu0.c.b16.cont [4/8] %v496, 128
        %509 = vxpose.xlu0.c.b16.cont [5/8] 0, 128
        %510 = vxpose.xlu0.c.b16.cont [6/8] 0, 128
        %511 = vxpose.xlu0.c.b16.cont [7/8] 0, 128
        %512 = vxpose.xlu0.c.b16.end [8/8] 0, 128
        %v513 = vpop.trf.xlu0
        %v514 = vpop.trf.xlu0
        %v515 = vpop.trf.xlu0
        %v516 = vpop.trf.xlu0
        %v517 = vpop.trf.xlu0
        %v518 = vpop.trf.xlu0
        %v519 = vpop.trf.xlu0
        %v520 = vpop.trf.xlu0
        %v522 = vsel %vm279, %v513, 0
        %v525 = vsel %vm279, %v514, 0
        %v528 = vsel %vm279, %v515, 0
        %v531 = vsel %vm279, %v516, 0
        %v534 = vsel %vm279, %v517, 0
        %536 = vmatprep.subr.bf16.mxu0 0
        %537 = vmatpush1.bf16.msra.mxu0 0
        %538 = vmatprep.subr.bf16.mxu0 0
        %539 = vmatpush1.bf16.msra.mxu0 0
        %540 = vmatprep.subr.bf16.mxu0 0
        %541 = vmatpush1.bf16.msra.mxu0 0
        %542 = vmatprep.subr.bf16.mxu0 0
        %543 = vmatpush1.bf16.msra.mxu0 0
        %544 = vmatprep.subr.bf16.mxu0 %v504
        %545 = vmatpush1.bf16.msra.mxu0 %v503
        %546 = vmatprep.subr.bf16.mxu0 %v502
        %547 = vmatpush1.bf16.msra.mxu0 %v501
        %548 = vmatprep.subr.bf16.mxu0 %v500
        %549 = vmatpush1.bf16.msra.mxu0 %v499
        %550 = vmatprep.subr.bf16.mxu0 %v498
        %551 = vmatpush1.bf16.msra.mxu0 %v497
        %552 = vmatprep.subr.bf16.mxu0 0
        %553 = vmatpush2.bf16.msra.mxu0 0
        %554 = vmatprep.subr.bf16.mxu0 0
        %555 = vmatpush2.bf16.msra.mxu0 0
        %556 = vmatprep.subr.bf16.mxu0 0
        %557 = vmatpush2.bf16.msra.mxu0 0
        %558 = vmatprep.subr.bf16.mxu0 0
        %559 = vmatpush2.bf16.msra.mxu0 0
        %560 = vmatprep.subr.bf16.mxu0 0
        %561 = vmatpush2.bf16.msra.mxu0 0
        %562 = vmatprep.subr.bf16.mxu0 0
        %563 = vmatpush2.bf16.msra.mxu0 0
        %564 = vmatprep.subr.bf16.mxu0 0
        %565 = vmatpush2.bf16.msra.mxu0 0
        %566 = vmatprep.subr.bf16.mxu0 0
        %567 = vmatpush2.bf16.msra.mxu0 0
        %568 = vmatprep.mubr.bf16.mxu0 0
        %569 = vmatmul.mubr.bf16.gmra.mxu0 %v522
        %v570 = vpop.f32.mrf.mxu0
        %v571 = vadd.f32 0.0, %v570
        %v572 = vpop.f32.mrf.mxu0
        %v573 = vadd.f32 0.0, %v572
        %v574 = vpop.f32.mrf.mxu0
        %v575 = vadd.f32 0.0, %v574
        %v576 = vpop.f32.mrf.mxu0
        %v577 = vadd.f32 0.0, %v576
        %578 = vmatprep.mubr.bf16.mxu0 0
        %579 = vmatmul.mubr.bf16.gmra.mxu0 %v525
        %v580 = vpop.f32.mrf.mxu0
        %v581 = vadd.f32 0.0, %v580
        %v582 = vpop.f32.mrf.mxu0
        %v583 = vadd.f32 0.0, %v582
        %v584 = vpop.f32.mrf.mxu0
        %v585 = vadd.f32 0.0, %v584
        %v586 = vpop.f32.mrf.mxu0
        %v587 = vadd.f32 0.0, %v586
        %588 = vmatprep.mubr.bf16.mxu0 0
        %589 = vmatmul.mubr.bf16.gmra.mxu0 %v528
        %v590 = vpop.f32.mrf.mxu0
        %v591 = vadd.f32 0.0, %v590
        %v592 = vpop.f32.mrf.mxu0
        %v593 = vadd.f32 0.0, %v592
        %v594 = vpop.f32.mrf.mxu0
        %v595 = vadd.f32 0.0, %v594
        %v596 = vpop.f32.mrf.mxu0
        %v597 = vadd.f32 0.0, %v596
        %598 = vmatprep.mubr.bf16.mxu0 0
        %599 = vmatmul.mubr.bf16.gmra.mxu0 %v531
        %v600 = vpop.f32.mrf.mxu0
        %v601 = vadd.f32 0.0, %v600
        %v602 = vpop.f32.mrf.mxu0
        %v603 = vadd.f32 0.0, %v602
        %v604 = vpop.f32.mrf.mxu0
        %v605 = vadd.f32 0.0, %v604
        %v606 = vpop.f32.mrf.mxu0
        %v607 = vadd.f32 0.0, %v606
        %608 = vmatprep.mubr.bf16.mxu0 0
        %609 = vmatmul.mubr.bf16.gmra.mxu0 %v534
        %v610 = vpop.f32.mrf.mxu0
        %v611 = vadd.f32 0.0, %v610
        %v612 = vpop.f32.mrf.mxu0
        %v613 = vadd.f32 0.0, %v612
        %v614 = vpop.f32.mrf.mxu0
        %v615 = vpop.f32.mrf.mxu0
        %616 = vdwg.mxu0
        %v617 = vadd.f32 %v611, 1e-09
        %v618 = vadd.f32 %v613, 1e-09
        %v619 = vrcp.pop %v617
        %v620 = vrcp.pop %v618
        %v621 = vlaneseq
        %v622 = vshrl.u32 %v621, 7
        %v623 = vsub.s32 0, %v622
        %v624 = vrot.slane %v619, %v623
        %v625 = vlaneseq
        %v626 = vshrl.u32 %v625, 7
        %v627 = vsub.s32 0, %v626
        %v628 = vrot.slane %v620, %v627
        %v629 = vmul.f32 %v571, %v624
        %v630 = vmul.f32 %v573, %v628
        %v631 = vmul.f32 %v575, %v624
        %v632 = vmul.f32 %v577, %v628
        %v633 = vmul.f32 %v581, %v624
        %v634 = vmul.f32 %v583, %v628
        %v635 = vmul.f32 %v585, %v624
        %v636 = vmul.f32 %v587, %v628
        %v637 = vmul.f32 %v591, %v624
        %v638 = vmul.f32 %v593, %v628
        %v639 = vmul.f32 %v595, %v624
        %v640 = vmul.f32 %v597, %v628
        %v641 = vmul.f32 %v601, %v624
        %v642 = vmul.f32 %v603, %v628
        %v643 = vmul.f32 %v605, %v624
        %v644 = vmul.f32 %v607, %v628
        %v645 = vadd.f32 %v235, %v629
        %v646 = vadd.f32 %v236, %v630
        %v647 = vadd.f32 %v237, %v631
        %v648 = vadd.f32 %v238, %v632
        %v649 = vadd.f32 %v239, %v633
        %v650 = vadd.f32 %v240, %v634
        %v651 = vadd.f32 %v241, %v635
        %v652 = vadd.f32 %v242, %v636
        %v653 = vadd.f32 %v243, %v637
        %v654 = vadd.f32 %v244, %v638
        %v655 = vadd.f32 %v245, %v639
        %v656 = vadd.f32 %v246, %v640
        %v657 = vadd.f32 %v247, %v641
        %v658 = vadd.f32 %v248, %v642
        %v659 = vadd.f32 %v249, %v643
        %v660 = vadd.f32 %v250, %v644
        %v661 = vmax.f32 %v645, 0.0
        %v662 = vmax.f32 %v646, 0.0
        %v663 = vmax.f32 %v647, 0.0
        %v664 = vmax.f32 %v648, 0.0
        %v665 = vmax.f32 %v649, 0.0
        %v666 = vmax.f32 %v650, 0.0
        %v667 = vmax.f32 %v651, 0.0
        %v668 = vmax.f32 %v652, 0.0
        %v669 = vmax.f32 %v653, 0.0
        %v670 = vmax.f32 %v654, 0.0
        %v671 = vmax.f32 %v655, 0.0
        %v672 = vmax.f32 %v656, 0.0
        %v673 = vmax.f32 %v657, 0.0
        %v674 = vmax.f32 %v658, 0.0
        %v675 = vmax.f32 %v659, 0.0
        %v676 = vmax.f32 %v660, 0.0
        %677 = vst [vmem:[%s217] sm:$0xff] %v661
        %678 = vst [vmem:[%s217 + $0x8] sm:$0xff] %v662
        %679 = vst [vmem:[%s217 + $0x10] sm:$0xff] %v663
        %680 = vst [vmem:[%s217 + $0x18] sm:$0xff] %v664
        %681 = vst [vmem:[%s217 + $0x20] sm:$0xff] %v665
        %682 = vst [vmem:[%s217 + $0x28] sm:$0xff] %v666
        %683 = vst [vmem:[%s217 + $0x30] sm:$0xff] %v667
        %684 = vst [vmem:[%s217 + $0x38] sm:$0xff] %v668
        %685 = vst [vmem:[%s217 + $0x40] sm:$0xff] %v669
        %686 = vst [vmem:[%s217 + $0x48] sm:$0xff] %v670
        %687 = vst [vmem:[%s217 + $0x50] sm:$0xff] %v671
        %688 = vst [vmem:[%s217 + $0x58] sm:$0xff] %v672
        %689 = vst [vmem:[%s217 + $0x60] sm:$0xff] %v673
        %690 = vst [vmem:[%s217 + $0x68] sm:$0xff] %v674
        %691 = vst [vmem:[%s217 + $0x70] sm:$0xff] %v675
        %692 = vst [vmem:[%s217 + $0x78] sm:$0xff] %v676
        %s693 = sand.u32 %s97, 1
        %s694 = scalar_lea.sflag [#allocation4], %s693
        %s695 = sand.u32 %s97, 1
        %s696 = smul.addr %s695, 128
        %s697 = scalar_lea.vmem [#allocation8], %s696
        // Predicated region
        $region45: #{tpu_custom_call.1} parent=31 // pred_check
          %p698 = pneg %p107
        $region46: #{tpu_custom_call.1} parent=31 // pred_check_branch
          %700 = sbr.rel (%p698) target = $region48
        $region47: #{tpu_custom_call.1} parent=31 // pred_region
          %s702 = ssub.s32 2048, 2048
          %703 = vsyncadd %s694, %s702
          %s704 = smul.addr %s21, 16
          %s705 = smul.addr %s704, 128
          %s706 = scalar_lea.hbm %s3, %s705
          %s707 = sshll.u32 %s697, 4
          %s708 = int_to_ptr.vmem [resolvable:$true] %s707
          %713 = dma.vmem_to_hbm [thread:$0]  %s708, 2048, %s706, %s694, 256, 256, 16
        $region48: #{tpu_custom_call.1} parent=31 // pred_fallthru
          _
      $region32: #{tpu_custom_call.1} parent=5 // pred_fallthru
        _
      %p714 = scmp.le.s32.totalorder 2, %s16
      // Predicated region
      $region49: #{tpu_custom_call.1} parent=5 // pred_check
        %p715 = pneg %p714
      $region50: #{tpu_custom_call.1} parent=5 // pred_check_branch
        %717 = sbr.rel (%p715) target = $region52
      $region51: #{tpu_custom_call.1} parent=5 // pred_region
        %s718 = ssub.s32 %s16, 2
        // Predicated region
        $region53: #{tpu_custom_call.1} parent=51 // pred_check
          %p719 = pneg %p113
        $region54: #{tpu_custom_call.1} parent=51 // pred_check_branch
          %721 = sbr.rel (%p719) target = $region56
        $region55: #{tpu_custom_call.1} parent=51 // pred_region
          %s722 = sand.u32 %s98, 1
          %s723 = scalar_lea.sflag [#allocation4], %s722
          %s724 = sand.u32 %s98, 1
          %s725 = smul.addr %s724, 128
          %s726 = scalar_lea.vmem [#allocation8], %s725
          %727 = dma.done %s723, 2048
        $region56: #{tpu_custom_call.1} parent=51 // pred_fallthru
          _
      $region52: #{tpu_custom_call.1} parent=5 // pred_fallthru
        _
    $region6: #{tpu_custom_call.1} parent=1 // loop_footer
      %s20 = sadd.s32 1, %s16
    $region7: #{tpu_custom_call.1} parent=1 // loop_footer_branch
      %15 = sbr.rel target = $region3
    $region8: #{tpu_custom_call.1} parent=1 // loop_exit
      _
    %728 = vsyncpa [#allocation3], 1
    %s729 = scalar_lea.sflag [#allocation3], 1
    %730 = vsyncpa %s729, 1
    %731 = vsyncpa [#allocation6], 1
    %732 = vsyncpa [#allocation4], 1
    %s733 = scalar_lea.sflag [#allocation4], 1
    %734 = vsyncpa %s733, 1

</llo_original>
